<compile_context>
chip_gen: v7x
topology: tpu7x:2x2x1
jax: 0.10.0
libtpu: 0.0.40
codegen_flags: <defaults>
</compile_context>

<pallas_src>
import numpy as np
import jax
import jax.numpy as jnp
from jax.experimental import pallas as pl
from jax.experimental.pallas import tpu as pltpu


# ----------------------------------------------------------------------------- kernel
def _make_agent_kernel(h2, w2, Bt, P):
    """Kernel factory for static (pooled H, pooled W, batch tile, conv3 positions)."""
    h3, w3 = h2 - 1, w2 - 1          # conv2 output spatial
    h4, w4 = h3 - 1, w3 - 1          # conv3 output spatial
    assert P == h4 * w4

    def kernel(p1_ref, w1_ref, w2_ref, w3_ref, wa1_ref, wa2_ref, bias_ref, out_ref):
        # --- unpack the single packed bias tile (free static slices) -----------
        b1t  = bias_ref[0:1, 0:64]     # conv1 bias tiled over the 4 pool members
        b2v  = bias_ref[1:2, 0:32]
        b3v  = bias_ref[2:3, 0:64]
        ba1v = bias_ref[3:4, 0:64]
        ba2v = bias_ref[4:5, :]        # actor bias, padded with -1e9 past real actions

        # --- Conv2d(3,16,(2,2)) + ReLU, all 4 pool members at once -------------
        # p1 lanes: [member00 | member01 | member10 | member11], each a 12-wide patch.
        # w1 is block-diagonal (48,64) so s1 lanes are [m00_c0..15 | m01 | m10 | m11].
        p1 = p1_ref[...].reshape(h2 * w2 * Bt, 48)
        s1 = jnp.dot(p1, w1_ref[...], preferred_element_type=jnp.float32)
        s1 = jnp.maximum(s1 + b1t, 0.0)                         # (M, 64), lane-dense

        # --- MaxPool2d(2,2): max over the four 16-lane groups ------------------
        # (lane-offset slices lower to XLU rotates; equivalent to the pltpu.roll form.)
        pooled = jnp.maximum(jnp.maximum(s1[:, 0:16], s1[:, 16:32]),
                             jnp.maximum(s1[:, 32:48], s1[:, 48:64]))
        pooled = pooled.reshape(h2, w2, Bt, 16)

        # --- Conv2d(16,32,(2,2)) + ReLU : im2col lane-concat + one matmul ------
        p2 = jnp.concatenate([pooled[di:di + h3, dj:dj + w3]
                              for di in range(2) for dj in range(2)], axis=-1)
        p2 = p2.reshape(h3 * w3 * Bt, 4 * 16)
        s2 = jnp.dot(p2, w2_ref[...], preferred_element_type=jnp.float32)
        s2 = jnp.maximum(s2 + b2v, 0.0).reshape(h3, w3, Bt, 32)

        # --- Conv2d(32,64,(2,2)) + ReLU : K = 128 ------------------------------
        p3 = jnp.concatenate([s2[di:di + h4, dj:dj + w4]
                              for di in range(2) for dj in range(2)], axis=-1)
        p3 = p3.reshape(h4 * w4 * Bt, 4 * 32)
        s3 = jnp.dot(p3, w3_ref[...], preferred_element_type=jnp.float32)
        s3 = jnp.maximum(s3 + b3v, 0.0)                         # (P*Bt, 64)

        # --- flatten (NCHW channel-major permutation folded into wa1) ----------
        if P == 1:
            emb = s3                                            # (Bt, 64)
        else:
            emb = jnp.concatenate([s3[p * Bt:(p + 1) * Bt] for p in range(P)],
                                  axis=-1)                      # (Bt, 64*P)

        # --- actor MLP: Linear -> Tanh -> Linear --------------------------------
        hid = jnp.tanh(jnp.dot(emb, wa1_ref[...],
                               preferred_element_type=jnp.float32) + ba1v)
        logits = jnp.dot(hid, wa2_ref[...],
                         preferred_element_type=jnp.float32) + ba2v   # (Bt, 128)

        # --- log_softmax over actions (pad lanes ~ -1e9 contribute ~0) ----------
        mx = jnp.max(logits, axis=1, keepdims=True)
        z = logits - mx
        lse = jnp.log(jnp.sum(jnp.exp(z), axis=1, keepdims=True))
        out_ref[...] = z - lse
        # TODO(synk): Categorical .sample() has no clean in-kernel equivalent here;
        # the kernel returns the log-softmax logits that parameterize the distribution.

    return kernel


# ----------------------------------------------------------------------------- wrapper
def agent_forward(obs_nhwc, params, *, batch_tile=None):
    (w1, b1, w2, b2, w3, b3, wa1, ba1, wa2, ba2) = params
    B, n, m, _ = obs_nhwc.shape
    A = wa2.shape[1]
    assert A <= 128, "action space must fit in one 128-lane vreg"

    h2, w2s = (n - 1) // 2, (m - 1) // 2     # after conv1 + 2x2/2 floor-mode pool
    h3, w3s = h2 - 1, w2s - 1                # conv2 output
    h4, w4s = h3 - 1, w3s - 1                # conv3 output
    assert h4 >= 1 and w4s >= 1, "observation too small for this network"
    P = h4 * w4s

    # --- batch tiling: pad batch to a multiple of the batch tile (sublane-aligned) --
    if batch_tile is None:
        batch_tile = min(((B + 7) // 8) * 8, 256)
    Bt = max(8, ((batch_tile + 7) // 8) * 8)
    Bp = ((B + Bt - 1) // Bt) * Bt
    nbt = Bp // Bt

    obs_p = jnp.pad(obs_nhwc.astype(jnp.float32),
                    ((0, Bp - B), (0, 0), (0, 0), (0, 0)))

    # --- conv1 im2col grouped by pool window, lane-dense 48 = 4 members x 12 ---------
    # Row layout (h2, w2, Bp); lane layout (pool_i, pool_j, tap_i, tap_j, cin).
    slabs = []
    for pi in range(2):
        for pj in range(2):
            for di in range(2):
                for dj in range(2):
                    a, c = pi + di, pj + dj
                    slabs.append(obs_p[:, a:a + 2 * h2:2, c:c + 2 * w2s:2, :])
    p1 = jnp.concatenate(slabs, axis=-1)            # (Bp, h2, w2, 48)
    p1 = jnp.transpose(p1, (1, 2, 0, 3))            # (h2, w2, Bp, 48)
    # TODO(synk): this im2col is still a wrapper-side XLA fusion (one extra HBM round
    # trip of ~16x the cropped obs); doing it in-kernel needs stride-2 reads along major
    # dims of the obs ref, which is left out here for lowering robustness.

    # --- weight prep (free at trace time) --------------------------------------------
    w1r = w1.reshape(4 * 3, 16)                     # HWIO -> (12, 16)
    w1blk = jnp.zeros((48, 64), jnp.float32)        # block-diagonal tap-packed conv1
    for t in range(4):
        w1blk = w1blk.at[12 * t:12 * (t + 1), 16 * t:16 * (t + 1)].set(w1r)
    w2r = w2.reshape(4 * 16, 32)
    w3r = w3.reshape(4 * 32, 64)
    if P == 1:
        wa1p = wa1
    else:   # fold PyTorch NCHW channel-major flatten into the weight row order
        wa1p = wa1.reshape(64, P, wa1.shape[1]).transpose(1, 0, 2).reshape(P * 64,
                                                                           wa1.shape[1])
    wa2p = jnp.zeros((64, 128), jnp.float32).at[:, :A].set(wa2)   # lane-padded actor head

    # --- pack all biases into a single (8,128) VMEM tile (one DMA descriptor) --------
    bias_pack = jnp.zeros((8, 128), jnp.float32)
    bias_pack = bias_pack.at[0, 0:64].set(jnp.tile(b1.reshape(-1), 4))
    bias_pack = bias_pack.at[1, 0:32].set(b2.reshape(-1))
    bias_pack = bias_pack.at[2, 0:64].set(b3.reshape(-1))
    bias_pack = bias_pack.at[3, 0:64].set(ba1.reshape(-1))
    bias_pack = bias_pack.at[4, 0:A].set(ba2.reshape(-1))
    if A < 128:
        bias_pack = bias_pack.at[4, A:128].set(-1e9)   # padded logits -> exp() ~ 0

    kernel = _make_agent_kernel(h2, w2s, Bt, P)
    const = lambda i: (0, 0)                        # weights stay VMEM-resident

    out = pl.pallas_call(
        kernel,
        out_shape=jax.ShapeDtypeStruct((Bp, 128), jnp.float32),
        grid=(nbt,),
        in_specs=[
            pl.BlockSpec((h2, w2s, Bt, 48), lambda i: (0, 0, i, 0)),   # p1: batch-tiled
            pl.BlockSpec((48, 64), const),                             # w1blk
            pl.BlockSpec((64, 32), const),                             # w2r
            pl.BlockSpec((128, 64), const),                            # w3r
            pl.BlockSpec((P * 64, 64), const),                         # wa1p
            pl.BlockSpec((64, 128), const),                            # wa2p
            pl.BlockSpec((8, 128), const),                             # packed biases
        ],
        out_specs=pl.BlockSpec((Bt, 128), lambda i: (i, 0)),
        compiler_params=pltpu.CompilerParams(
            dimension_semantics=("parallel",)),      # v7x: use both TensorCores
    )(p1, w1blk, w2r, w3r, wa1p, wa2p, bias_pack)
    return out[:B, :A]


# ----------------------------------------------------------------------------- params
def init_params(key, n, m, action_space):
    emb = ((n - 1) // 2 - 2) * ((m - 1) // 2 - 2) * 64
    ks = jax.random.split(key, 10)

    def u(k, shape, fan_in):
        b = 1.0 / np.sqrt(fan_in)
        return jax.random.uniform(k, shape, jnp.float32, -b, b)

    w1 = u(ks[0], (2, 2, 3, 16), 2 * 2 * 3)     # HWIO
    b1 = u(ks[1], (1, 16), 2 * 2 * 3)
    w2 = u(ks[2], (2, 2, 16, 32), 2 * 2 * 16)
    b2 = u(ks[3], (1, 32), 2 * 2 * 16)
    w3 = u(ks[4], (2, 2, 32, 64), 2 * 2 * 32)
    b3 = u(ks[5], (1, 64), 2 * 2 * 32)
    wa1 = u(ks[6], (emb, 64), emb)
    ba1 = u(ks[7], (1, 64), emb)
    wa2 = u(ks[8], (64, action_space), 64)
    ba2 = u(ks[9], (1, action_space), 64)
    return (w1, b1, w2, b2, w3, b3, wa1, ba1, wa2, ba2)


# ----------------------------------------------------------------------------- reference (plain JAX)
def reference_forward(obs_nhwc, params):
    (w1, b1, w2, b2, w3, b3, wa1, ba1, wa2, ba2) = params
    hi = jax.lax.Precision.HIGHEST

    def conv(x, k):
        dn = jax.lax.conv_dimension_numbers(x.shape, k.shape, ('NHWC', 'HWIO', 'NHWC'))
        return jax.lax.conv_general_dilated(x, k, (1, 1), 'VALID',
                                            dimension_numbers=dn, precision=hi)

    x = jax.nn.relu(conv(obs_nhwc, w1) + b1.reshape(1, 1, 1, -1))
    x = jax.lax.reduce_window(x, -jnp.inf, jax.lax.max, (1, 2, 2, 1), (1, 2, 2, 1), 'VALID')
    x = jax.nn.relu(conv(x, w2) + b2.reshape(1, 1, 1, -1))
    x = jax.nn.relu(conv(x, w3) + b3.reshape(1, 1, 1, -1))
    x = jnp.transpose(x, (0, 3, 1, 2)).reshape(x.shape[0], -1)   # NCHW flatten
    h = jnp.tanh(jnp.dot(x, wa1, precision=hi) + ba1)
    logits = jnp.dot(h, wa2, precision=hi) + ba2
    return jax.nn.log_softmax(logits, axis=1)


# ----------------------------------------------------------------------------- main
if __name__ == "__main__":
    key = jax.random.PRNGKey(0)
    k_obs, k_par, k_obs2, k_par2 = jax.random.split(key, 4)

    # Case 1: canonical MiniGrid 7x7x3 observation, 7 discrete actions (P = 1 path).
    B, n, m, A = 2, 7, 7, 7
    obs = jax.random.randint(k_obs, (B, n, m, 3), 0, 11).astype(jnp.float32)
    params = init_params(k_par, n, m, A)
    out = jax.block_until_ready(agent_forward(obs, params))
    ref = reference_forward(obs, params)
    assert out.shape == (B, A)
    np.testing.assert_allclose(np.asarray(out), np.asarray(ref), atol=5e-4, rtol=5e-4)

    # Case 2: 11x11 observation exercises the P > 1 (NCHW-flatten fold) path; batch 20
    # with an 8-row batch tile exercises the multi-step "parallel" grid with
    # VMEM-resident weights and padded batch rows.
    B2, n2, m2 = 20, 11, 11
    obs2 = jax.random.randint(k_obs2, (B2, n2, m2, 3), 0, 11).astype(jnp.float32)
    params2 = init_params(k_par2, n2, m2, A)
    out2 = jax.block_until_ready(agent_forward(obs2, params2, batch_tile=8))
    ref2 = reference_forward(obs2, params2)
    assert out2.shape == (B2, A)
    np.testing.assert_allclose(np.asarray(out2), np.asarray(ref2), atol=5e-4, rtol=5e-4)

    print("KERNEL_OK")
</pallas_src>

<mosaic_0001>
module attributes {stable_mosaic.version = 11 : i64} {
  func.func @kernel(%arg0: i32, %arg1: memref<3x3x8x48xf32, #tpu.memory_space<vmem>>, %arg2: memref<48x64xf32, #tpu.memory_space<vmem>>, %arg3: memref<64x32xf32, #tpu.memory_space<vmem>>, %arg4: memref<128x64xf32, #tpu.memory_space<vmem>>, %arg5: memref<64x64xf32, #tpu.memory_space<vmem>>, %arg6: memref<64x128xf32, #tpu.memory_space<vmem>>, %arg7: memref<8x128xf32, #tpu.memory_space<vmem>>, %arg8: memref<8x128xf32, #tpu.memory_space<vmem>>) attributes {dimension_semantics = [#tpu.dimension_semantics<parallel>], iteration_bounds = array<i64: 1>, scalar_prefetch = 0 : i64, scratch_operands = 0 : i64, tpu.core_type = #tpu.core_type<tc>, window_params = [{transform_indices = @transform_0, window_bounds = array<i64: 3, 3, 8, 48>}, {pipeline_mode = #tpu.pipeline_mode<synchronous>, transform_indices = @transform_1, window_bounds = array<i64: 48, 64>}, {pipeline_mode = #tpu.pipeline_mode<synchronous>, transform_indices = @transform_2, window_bounds = array<i64: 64, 32>}, {pipeline_mode = #tpu.pipeline_mode<synchronous>, transform_indices = @transform_3, window_bounds = array<i64: 128, 64>}, {pipeline_mode = #tpu.pipeline_mode<synchronous>, transform_indices = @transform_4, window_bounds = array<i64: 64, 64>}, {pipeline_mode = #tpu.pipeline_mode<synchronous>, transform_indices = @transform_5, window_bounds = array<i64: 64, 128>}, {pipeline_mode = #tpu.pipeline_mode<synchronous>, transform_indices = @transform_6, window_bounds = array<i64: 8, 128>}, {transform_indices = @transform_7, window_bounds = array<i64: 8, 128>}]} {
    %c0 = arith.constant 0 : index
    %c0_0 = arith.constant 0 : index
    %0 = vector.load %arg7[%c0, %c0_0] : memref<8x128xf32, #tpu.memory_space<vmem>>, vector<1x64xf32>
    %c1 = arith.constant 1 : index
    %c0_1 = arith.constant 0 : index
    %1 = vector.load %arg7[%c1, %c0_1] : memref<8x128xf32, #tpu.memory_space<vmem>>, vector<1x32xf32>
    %c2 = arith.constant 2 : index
    %c0_2 = arith.constant 0 : index
    %2 = vector.load %arg7[%c2, %c0_2] : memref<8x128xf32, #tpu.memory_space<vmem>>, vector<1x64xf32>
    %c3 = arith.constant 3 : index
    %c0_3 = arith.constant 0 : index
    %3 = vector.load %arg7[%c3, %c0_3] : memref<8x128xf32, #tpu.memory_space<vmem>>, vector<1x64xf32>
    %c4 = arith.constant 4 : index
    %c0_4 = arith.constant 0 : index
    %4 = vector.load %arg7[%c4, %c0_4] : memref<8x128xf32, #tpu.memory_space<vmem>>, vector<1x128xf32>
    %c0_5 = arith.constant 0 : index
    %c0_6 = arith.constant 0 : index
    %c0_7 = arith.constant 0 : index
    %c0_8 = arith.constant 0 : index
    %5 = vector.load %arg1[%c0_5, %c0_6, %c0_7, %c0_8] : memref<3x3x8x48xf32, #tpu.memory_space<vmem>>, vector<3x3x8x48xf32>
    %6 = vector.shape_cast %5 : vector<3x3x8x48xf32> to vector<72x48xf32>
    %c0_9 = arith.constant 0 : index
    %c0_10 = arith.constant 0 : index
    %7 = vector.load %arg2[%c0_9, %c0_10] : memref<48x64xf32, #tpu.memory_space<vmem>>, vector<48x64xf32>
    %cst = arith.constant dense<0.000000e+00> : vector<72x64xf32>
    %8 = tpu.matmul %6, %7, %cst {dimension_numbers = #tpu.dot_dimension_numbers<[1], [0], [0], [1], [0, 0, 1, 1], [], []>} : vector<72x48xf32>, vector<48x64xf32>, vector<72x64xf32> -> vector<72x64xf32>
    %9 = vector.broadcast %0 : vector<1x64xf32> to vector<72x64xf32>
    %10 = arith.addf %8, %9 : vector<72x64xf32>
    %cst_11 = arith.constant 0.000000e+00 : f32
    %11 = vector.broadcast %cst_11 : f32 to vector<72x64xf32>
    %12 = arith.maximumf %10, %11 : vector<72x64xf32>
    %13 = vector.extract_strided_slice %12 {offsets = [0, 0], sizes = [72, 16], strides = [1, 1]} : vector<72x64xf32> to vector<72x16xf32>
    %14 = vector.extract_strided_slice %12 {offsets = [0, 16], sizes = [72, 16], strides = [1, 1]} : vector<72x64xf32> to vector<72x16xf32>
    %15 = arith.maximumf %13, %14 : vector<72x16xf32>
    %16 = vector.extract_strided_slice %12 {offsets = [0, 32], sizes = [72, 16], strides = [1, 1]} : vector<72x64xf32> to vector<72x16xf32>
    %17 = vector.extract_strided_slice %12 {offsets = [0, 48], sizes = [72, 16], strides = [1, 1]} : vector<72x64xf32> to vector<72x16xf32>
    %18 = arith.maximumf %16, %17 : vector<72x16xf32>
    %19 = arith.maximumf %15, %18 : vector<72x16xf32>
    %20 = vector.shape_cast %19 : vector<72x16xf32> to vector<3x3x8x16xf32>
    %21 = vector.extract_strided_slice %20 {offsets = [0, 0, 0, 0], sizes = [2, 2, 8, 16], strides = [1, 1, 1, 1]} : vector<3x3x8x16xf32> to vector<2x2x8x16xf32>
    %22 = vector.extract_strided_slice %20 {offsets = [0, 1, 0, 0], sizes = [2, 2, 8, 16], strides = [1, 1, 1, 1]} : vector<3x3x8x16xf32> to vector<2x2x8x16xf32>
    %23 = vector.extract_strided_slice %20 {offsets = [1, 0, 0, 0], sizes = [2, 2, 8, 16], strides = [1, 1, 1, 1]} : vector<3x3x8x16xf32> to vector<2x2x8x16xf32>
    %24 = vector.extract_strided_slice %20 {offsets = [1, 1, 0, 0], sizes = [2, 2, 8, 16], strides = [1, 1, 1, 1]} : vector<3x3x8x16xf32> to vector<2x2x8x16xf32>
    %25 = tpu.concatenate %21, %22, %23, %24 in 3 : vector<2x2x8x16xf32>, vector<2x2x8x16xf32>, vector<2x2x8x16xf32>, vector<2x2x8x16xf32> -> vector<2x2x8x64xf32>
    %26 = vector.shape_cast %25 : vector<2x2x8x64xf32> to vector<32x64xf32>
    %c0_12 = arith.constant 0 : index
    %c0_13 = arith.constant 0 : index
    %27 = vector.load %arg3[%c0_12, %c0_13] : memref<64x32xf32, #tpu.memory_space<vmem>>, vector<64x32xf32>
    %cst_14 = arith.constant dense<0.000000e+00> : vector<32x32xf32>
    %28 = tpu.matmul %26, %27, %cst_14 {dimension_numbers = #tpu.dot_dimension_numbers<[1], [0], [0], [1], [0, 0, 1, 1], [], []>} : vector<32x64xf32>, vector<64x32xf32>, vector<32x32xf32> -> vector<32x32xf32>
    %29 = vector.broadcast %1 : vector<1x32xf32> to vector<32x32xf32>
    %30 = arith.addf %28, %29 : vector<32x32xf32>
    %cst_15 = arith.constant 0.000000e+00 : f32
    %31 = vector.broadcast %cst_15 : f32 to vector<32x32xf32>
    %32 = arith.maximumf %30, %31 : vector<32x32xf32>
    %33 = vector.shape_cast %32 : vector<32x32xf32> to vector<2x2x8x32xf32>
    %34 = vector.extract_strided_slice %33 {offsets = [0, 0, 0, 0], sizes = [1, 1, 8, 32], strides = [1, 1, 1, 1]} : vector<2x2x8x32xf32> to vector<1x1x8x32xf32>
    %35 = vector.extract_strided_slice %33 {offsets = [0, 1, 0, 0], sizes = [1, 1, 8, 32], strides = [1, 1, 1, 1]} : vector<2x2x8x32xf32> to vector<1x1x8x32xf32>
    %36 = vector.extract_strided_slice %33 {offsets = [1, 0, 0, 0], sizes = [1, 1, 8, 32], strides = [1, 1, 1, 1]} : vector<2x2x8x32xf32> to vector<1x1x8x32xf32>
    %37 = vector.extract_strided_slice %33 {offsets = [1, 1, 0, 0], sizes = [1, 1, 8, 32], strides = [1, 1, 1, 1]} : vector<2x2x8x32xf32> to vector<1x1x8x32xf32>
    %38 = tpu.concatenate %34, %35, %36, %37 in 3 : vector<1x1x8x32xf32>, vector<1x1x8x32xf32>, vector<1x1x8x32xf32>, vector<1x1x8x32xf32> -> vector<1x1x8x128xf32>
    %39 = vector.shape_cast %38 : vector<1x1x8x128xf32> to vector<8x128xf32>
    %c0_16 = arith.constant 0 : index
    %c0_17 = arith.constant 0 : index
    %40 = vector.load %arg4[%c0_16, %c0_17] : memref<128x64xf32, #tpu.memory_space<vmem>>, vector<128x64xf32>
    %cst_18 = arith.constant dense<0.000000e+00> : vector<8x64xf32>
    %41 = tpu.matmul %39, %40, %cst_18 {dimension_numbers = #tpu.dot_dimension_numbers<[1], [0], [0], [1], [0, 0, 1, 1], [], []>} : vector<8x128xf32>, vector<128x64xf32>, vector<8x64xf32> -> vector<8x64xf32>
    %42 = vector.broadcast %2 : vector<1x64xf32> to vector<8x64xf32>
    %43 = arith.addf %41, %42 : vector<8x64xf32>
    %cst_19 = arith.constant 0.000000e+00 : f32
    %44 = vector.broadcast %cst_19 : f32 to vector<8x64xf32>
    %45 = arith.maximumf %43, %44 : vector<8x64xf32>
    %c0_20 = arith.constant 0 : index
    %c0_21 = arith.constant 0 : index
    %46 = vector.load %arg5[%c0_20, %c0_21] : memref<64x64xf32, #tpu.memory_space<vmem>>, vector<64x64xf32>
    %cst_22 = arith.constant dense<0.000000e+00> : vector<8x64xf32>
    %47 = tpu.matmul %45, %46, %cst_22 {dimension_numbers = #tpu.dot_dimension_numbers<[1], [0], [0], [1], [0, 0, 1, 1], [], []>} : vector<8x64xf32>, vector<64x64xf32>, vector<8x64xf32> -> vector<8x64xf32>
    %48 = vector.broadcast %3 : vector<1x64xf32> to vector<8x64xf32>
    %49 = arith.addf %47, %48 : vector<8x64xf32>
    %50 = math.tanh %49 : vector<8x64xf32>
    %c0_23 = arith.constant 0 : index
    %c0_24 = arith.constant 0 : index
    %51 = vector.load %arg6[%c0_23, %c0_24] : memref<64x128xf32, #tpu.memory_space<vmem>>, vector<64x128xf32>
    %cst_25 = arith.constant dense<0.000000e+00> : vector<8x128xf32>
    %52 = tpu.matmul %50, %51, %cst_25 {dimension_numbers = #tpu.dot_dimension_numbers<[1], [0], [0], [1], [0, 0, 1, 1], [], []>} : vector<8x64xf32>, vector<64x128xf32>, vector<8x128xf32> -> vector<8x128xf32>
    %53 = vector.broadcast %4 : vector<1x128xf32> to vector<8x128xf32>
    %54 = arith.addf %52, %53 : vector<8x128xf32>
    %cst_26 = arith.constant dense<0xFF800000> : vector<8xf32>
    %55 = vector.multi_reduction <maximumf>, %54, %cst_26 [1] : vector<8x128xf32> to vector<8xf32>
    %56 = vector.shape_cast %55 : vector<8xf32> to vector<8x1xf32>
    %57 = vector.broadcast %56 : vector<8x1xf32> to vector<8x128xf32>
    %58 = arith.subf %54, %57 : vector<8x128xf32>
    %59 = math.exp %58 : vector<8x128xf32>
    %cst_27 = arith.constant dense<0.000000e+00> : vector<8xf32>
    %60 = vector.multi_reduction <add>, %59, %cst_27 [1] : vector<8x128xf32> to vector<8xf32>
    %61 = vector.shape_cast %60 : vector<8xf32> to vector<8x1xf32>
    %62 = math.log %61 : vector<8x1xf32>
    %63 = vector.broadcast %62 : vector<8x1xf32> to vector<8x128xf32>
    %64 = arith.subf %58, %63 : vector<8x128xf32>
    %c0_28 = arith.constant 0 : index
    %c0_29 = arith.constant 0 : index
    %65 = vector.load %arg8[%c0_28, %c0_29] : memref<8x128xf32, #tpu.memory_space<vmem>>, vector<8x128xf32>
    tpu.vector_store %arg8[%c0_28, %c0_29], %64 {strides = array<i32>} : memref<8x128xf32, #tpu.memory_space<vmem>>, vector<8x128xf32>,
    return
  }
  func.func @transform_0(%arg0: i32) -> (i32, i32, i32, i32) {
    %c0_i32 = arith.constant 0 : i32
    %c0_i32_0 = arith.constant 0 : i32
    %c0_i32_1 = arith.constant 0 : i32
    %c0_i32_2 = arith.constant 0 : i32
    return %c0_i32, %c0_i32_0, %arg0, %c0_i32_1 : i32, i32, i32, i32
  }
  func.func @transform_1(%arg0: i32) -> (i32, i32) {
    %c0_i32 = arith.constant 0 : i32
    %c0_i32_0 = arith.constant 0 : i32
    %c0_i32_1 = arith.constant 0 : i32
    return %c0_i32, %c0_i32_0 : i32, i32
  }
  func.func @transform_2(%arg0: i32) -> (i32, i32) {
    %c0_i32 = arith.constant 0 : i32
    %c0_i32_0 = arith.constant 0 : i32
    %c0_i32_1 = arith.constant 0 : i32
    return %c0_i32, %c0_i32_0 : i32, i32
  }
  func.func @transform_3(%arg0: i32) -> (i32, i32) {
    %c0_i32 = arith.constant 0 : i32
    %c0_i32_0 = arith.constant 0 : i32
    %c0_i32_1 = arith.constant 0 : i32
    return %c0_i32, %c0_i32_0 : i32, i32
  }
  func.func @transform_4(%arg0: i32) -> (i32, i32) {
    %c0_i32 = arith.constant 0 : i32
    %c0_i32_0 = arith.constant 0 : i32
    %c0_i32_1 = arith.constant 0 : i32
    return %c0_i32, %c0_i32_0 : i32, i32
  }
  func.func @transform_5(%arg0: i32) -> (i32, i32) {
    %c0_i32 = arith.constant 0 : i32
    %c0_i32_0 = arith.constant 0 : i32
    %c0_i32_1 = arith.constant 0 : i32
    return %c0_i32, %c0_i32_0 : i32, i32
  }
  func.func @transform_6(%arg0: i32) -> (i32, i32) {
    %c0_i32 = arith.constant 0 : i32
    %c0_i32_0 = arith.constant 0 : i32
    %c0_i32_1 = arith.constant 0 : i32
    return %c0_i32, %c0_i32_0 : i32, i32
  }
  func.func @transform_7(%arg0: i32) -> (i32, i32) {
    %c0_i32 = arith.constant 0 : i32
    %c0_i32_0 = arith.constant 0 : i32
    return %arg0, %c0_i32 : i32, i32
  }
}

</mosaic_0001>

<llo_original>
// kernel: tpu_custom_call.1
$region0: #{tpu_custom_call.1}
  #allocation0 [shape = 'u32[]', space=smem, size = 0x4, offset = 0x4, fixed_abs, tag = 'smem constant byte address 0x4 - core index']
  #allocation1 [shape = 'u32[144,128]{1,0:T(1,128)}', space=vmem, size = 0x12000, scoped, tag = 'internal scratch']
  %s0 = inlined_call_operand.vmem [shape: f32[3,3,8,48], index: 0, kind: input, shape index: {}]
  %s1 = inlined_call_operand.hbm [shape: f32[48,64], index: 1, kind: input, shape index: {}]
  %s2 = inlined_call_operand.vmem [shape: f32[64,32], index: 2, kind: input, shape index: {}]
  %s3 = inlined_call_operand.vmem [shape: f32[128,64], index: 3, kind: input, shape index: {}]
  %s4 = inlined_call_operand.vmem [shape: f32[64,64], index: 4, kind: input, shape index: {}]
  %s5 = inlined_call_operand.vmem [shape: f32[64,128], index: 5, kind: input, shape index: {}]
  %s6 = inlined_call_operand.vmem [shape: f32[8,128], index: 6, kind: input, shape index: {}]
  %s7 = inlined_call_operand.hbm [shape: f32[8,128], index: 7, kind: output, shape index: {}]
  %s8 = sld [smem:[#allocation0]]
  $region42: #{tpu_custom_call.1} parent=0
    _
  %s10 = ssub.s32 1, %s8
  %s11 = scalar_select 0, %s10, %s8
  $region1: #{tpu_custom_call.1} parent=0
    #allocation2 [shape = 'u8[24576]{0}', space=vmem, size = 0x6000, scoped, tag = 'input window, operand 1, single buffered']
    #allocation3 [shape = 's32[1]{0}', space=sflag, size = 0x4, scoped, tag = 'scoped memory for tpu_custom_call.1']
    #allocation4 [shape = 's32[1]{0}', space=sflag, size = 0x4, scoped, tag = 'scoped memory for tpu_custom_call.1']
    #allocation5 [shape = 'u8[4096]{0}', space=vmem, size = 0x1000, scoped, tag = 'output window, operand 0, single buffered']
    %12 = vsyncpa [#allocation3], 0
    %13 = vsyncpa [#allocation4], 0
    // Predicated region
    $region2: #{tpu_custom_call.1} parent=1 // pred_check
      _
    $region3: #{tpu_custom_call.1} parent=1 // pred_check_branch
      %15 = sbr.rel (0) target = $region5
    $region4: #{tpu_custom_call.1} parent=1 // pred_region
      _
    $region5: #{tpu_custom_call.1} parent=1 // pred_fallthru
      _
    // Predicated region
    $region6: #{tpu_custom_call.1} parent=1 // pred_check
      _
    $region7: #{tpu_custom_call.1} parent=1 // pred_check_branch
      %17 = sbr.rel (0) target = $region9
    $region8: #{tpu_custom_call.1} parent=1 // pred_region
      %s19 = ssub.s32 768, 768
      %20 = vsyncadd [#allocation3], %s19
      %s21 = sshll.u32 [#allocation2], 4
      %s22 = int_to_ptr.vmem [resolvable:$true] %s21
      %27 = dma.hbm_to_vmem [thread:$0]  %s1, 768, %s22, [#allocation3], 128, 128, 8
    $region9: #{tpu_custom_call.1} parent=1 // pred_fallthru
      _
    // Predicated region
    $region10: #{tpu_custom_call.1} parent=1 // pred_check
      _
    $region11: #{tpu_custom_call.1} parent=1 // pred_check_branch
      %29 = sbr.rel (0) target = $region13
    $region12: #{tpu_custom_call.1} parent=1 // pred_region
      _
    $region13: #{tpu_custom_call.1} parent=1 // pred_fallthru
      _
    // Predicated region
    $region14: #{tpu_custom_call.1} parent=1 // pred_check
      _
    $region15: #{tpu_custom_call.1} parent=1 // pred_check_branch
      %31 = sbr.rel (0) target = $region17
    $region16: #{tpu_custom_call.1} parent=1 // pred_region
      _
    $region17: #{tpu_custom_call.1} parent=1 // pred_fallthru
      _
    // Predicated region
    $region18: #{tpu_custom_call.1} parent=1 // pred_check
      _
    $region19: #{tpu_custom_call.1} parent=1 // pred_check_branch
      %33 = sbr.rel (0) target = $region21
    $region20: #{tpu_custom_call.1} parent=1 // pred_region
      _
    $region21: #{tpu_custom_call.1} parent=1 // pred_fallthru
      _
    // Predicated region
    $region22: #{tpu_custom_call.1} parent=1 // pred_check
      _
    $region23: #{tpu_custom_call.1} parent=1 // pred_check_branch
      %35 = sbr.rel (0) target = $region25
    $region24: #{tpu_custom_call.1} parent=1 // pred_region
      _
    $region25: #{tpu_custom_call.1} parent=1 // pred_fallthru
      _
    // Predicated region
    $region26: #{tpu_custom_call.1} parent=1 // pred_check
      _
    $region27: #{tpu_custom_call.1} parent=1 // pred_check_branch
      %37 = sbr.rel (0) target = $region29
    $region28: #{tpu_custom_call.1} parent=1 // pred_region
      _
    $region29: #{tpu_custom_call.1} parent=1 // pred_fallthru
      _
    // Predicated region
    $region30: #{tpu_custom_call.1} parent=1 // pred_check
      _
    $region31: #{tpu_custom_call.1} parent=1 // pred_check_branch
      %39 = sbr.rel (0) target = $region33
    $region32: #{tpu_custom_call.1} parent=1 // pred_region
      %40 = dma.done [#allocation3], 768
    $region33: #{tpu_custom_call.1} parent=1 // pred_fallthru
      _
    %v41 = vld [vmem:[%s6] sm:$0x1]
    %v42 = vld [vmem:[%s6 + $0x1] sm:$0x1]
    %v43 = vld [vmem:[%s6 + $0x2] sm:$0x1]
    %v44 = vld [vmem:[%s6 + $0x3] sm:$0x1]
    %v45 = vld [vmem:[%s6 + $0x4] sm:$0x1]
    %v46 = vld [vmem:[%s0] sm:$0xff]
    %v47 = vld [vmem:[%s0 + $0x8] sm:$0xff]
    %v48 = vld [vmem:[%s0 + $0x10] sm:$0xff]
    %v49 = vld [vmem:[%s0 + $0x18] sm:$0xff]
    %v50 = vld [vmem:[%s0 + $0x20] sm:$0xff]
    %v51 = vld [vmem:[%s0 + $0x28] sm:$0xff]
    %v52 = vld [vmem:[%s0 + $0x30] sm:$0xff]
    %v53 = vld [vmem:[%s0 + $0x38] sm:$0xff]
    %v54 = vld [vmem:[%s0 + $0x40] sm:$0xff]
    %v55 = vld [vmem:[#allocation2] sm:$0xff]
    %v56 = vld [vmem:[#allocation2 + $0x8] sm:$0xff]
    %v57 = vld [vmem:[#allocation2 + $0x10] sm:$0xff]
    %v58 = vld [vmem:[#allocation2 + $0x18] sm:$0xff]
    %v59 = vld [vmem:[#allocation2 + $0x20] sm:$0xff]
    %v60 = vld [vmem:[#allocation2 + $0x28] sm:$0xff]
    %v61 = vlaneseq
    %v62 = vshrl.u32 %v61, 7
    %v63 = vsub.s32 0, %v62
    %v64 = vrot.slane %v41, %v63
    %vm65 = vcmask 392192
    %v67 = vsel %vm65, %v46, 0
    %v70 = vsel %vm65, %v47, 0
    %v73 = vsel %vm65, %v48, 0
    %v76 = vsel %vm65, %v49, 0
    %v79 = vsel %vm65, %v50, 0
    %v82 = vsel %vm65, %v51, 0
    %v85 = vsel %vm65, %v52, 0
    %v88 = vsel %vm65, %v53, 0
    %v91 = vsel %vm65, %v54, 0
    %93 = vmatprep.subr.mxu0 0.0
    %94 = vmatpush1.msra.mxu0 %v55
    %95 = vmatprep.subr.mxu0 0.0
    %96 = vmatpush1.msra.mxu0 %v56
    %97 = vmatprep.subr.mxu0 0.0
    %98 = vmatpush1.msra.mxu0 %v57
    %99 = vmatprep.subr.mxu0 0.0
    %100 = vmatpush1.msra.mxu0 %v58
    %101 = vmatprep.subr.mxu0 0.0
    %102 = vmatpush1.msra.mxu0 %v59
    %103 = vmatprep.subr.mxu0 0.0
    %104 = vmatpush1.msra.mxu0 %v60
    %105 = vmatprep.subr.mxu0 0.0
    %106 = vmatpush1.msra.mxu0 0.0
    %107 = vmatprep.subr.mxu0 0.0
    %108 = vmatpush1.msra.mxu0 0.0
    %109 = vmatprep.subr.mxu0 0.0
    %110 = vmatpush1.msra.mxu0 0.0
    %111 = vmatprep.subr.mxu0 0.0
    %112 = vmatpush1.msra.mxu0 0.0
    %113 = vmatprep.subr.mxu0 0.0
    %114 = vmatpush1.msra.mxu0 0.0
    %115 = vmatprep.subr.mxu0 0.0
    %116 = vmatpush1.msra.mxu0 0.0
    %117 = vmatprep.subr.mxu0 0.0
    %118 = vmatpush1.msra.mxu0 0.0
    %119 = vmatprep.subr.mxu0 0.0
    %120 = vmatpush1.msra.mxu0 0.0
    %121 = vmatprep.subr.mxu0 0.0
    %122 = vmatpush1.msra.mxu0 0.0
    %123 = vmatprep.subr.mxu0 0.0
    %124 = vmatpush1.msra.mxu0 0.0
    %125 = vmatprep.subr.mxu0 0.0
    %126 = vmatpush1.msra.mxu0 0.0
    %127 = vmatprep.subr.mxu0 0.0
    %128 = vmatpush1.msra.mxu0 0.0
    %129 = vmatprep.subr.mxu0 0.0
    %130 = vmatpush1.msra.mxu0 0.0
    %131 = vmatprep.subr.mxu0 0.0
    %132 = vmatpush1.msra.mxu0 0.0
    %133 = vmatprep.subr.mxu0 0.0
    %134 = vmatpush1.msra.mxu0 0.0
    %135 = vmatprep.subr.mxu0 0.0
    %136 = vmatpush1.msra.mxu0 0.0
    %137 = vmatprep.subr.mxu0 0.0
    %138 = vmatpush1.msra.mxu0 0.0
    %139 = vmatprep.subr.mxu0 0.0
    %140 = vmatpush1.msra.mxu0 0.0
    %141 = vmatprep.subr.mxu0 0.0
    %142 = vmatpush1.msra.mxu0 0.0
    %143 = vmatprep.subr.mxu0 0.0
    %144 = vmatpush1.msra.mxu0 0.0
    %145 = vmatprep.subr.mxu0 0.0
    %146 = vmatpush1.msra.mxu0 0.0
    %147 = vmatprep.subr.mxu0 0.0
    %148 = vmatpush1.msra.mxu0 0.0
    %149 = vmatprep.subr.mxu0 0.0
    %150 = vmatpush1.msra.mxu0 0.0
    %151 = vmatprep.subr.mxu0 0.0
    %152 = vmatpush1.msra.mxu0 0.0
    %153 = vmatprep.subr.mxu0 0.0
    %154 = vmatpush1.msra.mxu0 0.0
    %155 = vmatprep.subr.mxu0 0.0
    %156 = vmatpush1.msra.mxu0 0.0
    %157 = vmatprep.mubr.f32.mxu0 0.0
    %158 = vmatmul.mubr.f32.gmra.mrb[0].mxu0 %v67
    %v159 = vpop.f32.mrb[0].mxu0
    %v160 = vadd.f32 %v64, %v159
    %v161 = vpop.f32.mrb[0].mxu0
    %162 = vmatprep.mubr.f32.mxu0 0.0
    %163 = vmatmul.mubr.f32.gmra.mrb[0].mxu0 %v70
    %v164 = vpop.f32.mrb[0].mxu0
    %v165 = vadd.f32 %v64, %v164
    %v166 = vpop.f32.mrb[0].mxu0
    %167 = vmatprep.mubr.f32.mxu0 0.0
    %168 = vmatmul.mubr.f32.gmra.mrb[0].mxu0 %v73
    %v169 = vpop.f32.mrb[0].mxu0
    %v170 = vadd.f32 %v64, %v169
    %v171 = vpop.f32.mrb[0].mxu0
    %172 = vmatprep.mubr.f32.mxu0 0.0
    %173 = vmatmul.mubr.f32.gmra.mrb[0].mxu0 %v76
    %v174 = vpop.f32.mrb[0].mxu0
    %v175 = vadd.f32 %v64, %v174
    %v176 = vpop.f32.mrb[0].mxu0
    %177 = vmatprep.mubr.f32.mxu0 0.0
    %178 = vmatmul.mubr.f32.gmra.mrb[0].mxu0 %v79
    %v179 = vpop.f32.mrb[0].mxu0
    %v180 = vadd.f32 %v64, %v179
    %v181 = vpop.f32.mrb[0].mxu0
    %182 = vmatprep.mubr.f32.mxu0 0.0
    %183 = vmatmul.mubr.f32.gmra.mrb[0].mxu0 %v82
    %v184 = vpop.f32.mrb[0].mxu0
    %v185 = vadd.f32 %v64, %v184
    %v186 = vpop.f32.mrb[0].mxu0
    %187 = vmatprep.mubr.f32.mxu0 0.0
    %188 = vmatmul.mubr.f32.gmra.mrb[0].mxu0 %v85
    %v189 = vpop.f32.mrb[0].mxu0
    %v190 = vadd.f32 %v64, %v189
    %v191 = vpop.f32.mrb[0].mxu0
    %192 = vmatprep.mubr.f32.mxu0 0.0
    %193 = vmatmul.mubr.f32.gmra.mrb[0].mxu0 %v88
    %v194 = vpop.f32.mrb[0].mxu0
    %v195 = vadd.f32 %v64, %v194
    %v196 = vpop.f32.mrb[0].mxu0
    %197 = vmatprep.mubr.f32.mxu0 0.0
    %198 = vmatmul.mubr.f32.gmra.mrb[0].mxu0 %v91
    %v199 = vpop.f32.mrb[0].mxu0
    %v200 = vadd.f32 %v64, %v199
    %v201 = vpop.f32.mrb[0].mxu0
    %202 = vdwg.mxu0
    %v203 = vmax.f32 %v160, 0.0
    %v204 = vmax.f32 %v165, 0.0
    %v205 = vmax.f32 %v170, 0.0
    %v206 = vmax.f32 %v175, 0.0
    %v207 = vmax.f32 %v180, 0.0
    %v208 = vmax.f32 %v185, 0.0
    %v209 = vmax.f32 %v190, 0.0
    %v210 = vmax.f32 %v195, 0.0
    %v211 = vmax.f32 %v200, 0.0
    %221 = vrot.lane.b32.xlu0 %v203, 112
    %v222 = vpop.permute.xlu0 %221
    %223 = vrot.lane.b32.xlu0 %v204, 112
    %v224 = vpop.permute.xlu0 %223
    %225 = vrot.lane.b32.xlu0 %v205, 112
    %v226 = vpop.permute.xlu0 %225
    %227 = vrot.lane.b32.xlu0 %v206, 112
    %v228 = vpop.permute.xlu0 %227
    %229 = vrot.lane.b32.xlu0 %v207, 112
    %v230 = vpop.permute.xlu0 %229
    %231 = vrot.lane.b32.xlu0 %v208, 112
    %v232 = vpop.permute.xlu0 %231
    %233 = vrot.lane.b32.xlu0 %v209, 112
    %v234 = vpop.permute.xlu0 %233
    %235 = vrot.lane.b32.xlu0 %v210, 112
    %v236 = vpop.permute.xlu0 %235
    %237 = vrot.lane.b32.xlu0 %v211, 112
    %v238 = vpop.permute.xlu0 %237
    %v248 = vmax.f32 %v203, %v222
    %v249 = vmax.f32 %v204, %v224
    %v250 = vmax.f32 %v205, %v226
    %v251 = vmax.f32 %v206, %v228
    %v252 = vmax.f32 %v207, %v230
    %v253 = vmax.f32 %v208, %v232
    %v254 = vmax.f32 %v209, %v234
    %v255 = vmax.f32 %v210, %v236
    %v256 = vmax.f32 %v211, %v238
    %266 = vrot.lane.b32.xlu0 %v248, 96
    %v267 = vpop.permute.xlu0 %266
    %268 = vrot.lane.b32.xlu0 %v249, 96
    %v269 = vpop.permute.xlu0 %268
    %270 = vrot.lane.b32.xlu0 %v250, 96
    %v271 = vpop.permute.xlu0 %270
    %272 = vrot.lane.b32.xlu0 %v251, 96
    %v273 = vpop.permute.xlu0 %272
    %274 = vrot.lane.b32.xlu0 %v252, 96
    %v275 = vpop.permute.xlu0 %274
    %276 = vrot.lane.b32.xlu0 %v253, 96
    %v277 = vpop.permute.xlu0 %276
    %278 = vrot.lane.b32.xlu0 %v254, 96
    %v279 = vpop.permute.xlu0 %278
    %280 = vrot.lane.b32.xlu0 %v255, 96
    %v281 = vpop.permute.xlu0 %280
    %282 = vrot.lane.b32.xlu0 %v256, 96
    %v283 = vpop.permute.xlu0 %282
    %v293 = vmax.f32 %v248, %v267
    %v294 = vmax.f32 %v249, %v269
    %v295 = vmax.f32 %v250, %v271
    %v296 = vmax.f32 %v251, %v273
    %v297 = vmax.f32 %v252, %v275
    %v298 = vmax.f32 %v253, %v277
    %v299 = vmax.f32 %v254, %v279
    %v300 = vmax.f32 %v255, %v281
    %v301 = vmax.f32 %v256, %v283
    %306 = vrot.lane.b32.xlu0 %v294, 16
    %v307 = vpop.permute.xlu0 %306
    %308 = vrot.lane.b32.xlu0 %v295, 16
    %v309 = vpop.permute.xlu0 %308
    %310 = vrot.lane.b32.xlu0 %v297, 16
    %v311 = vpop.permute.xlu0 %310
    %312 = vrot.lane.b32.xlu0 %v298, 16
    %v313 = vpop.permute.xlu0 %312
    %321 = vrot.lane.b32.xlu0 %v296, 32
    %v322 = vpop.permute.xlu0 %321
    %323 = vrot.lane.b32.xlu0 %v297, 32
    %v324 = vpop.permute.xlu0 %323
    %325 = vrot.lane.b32.xlu0 %v299, 32
    %v326 = vpop.permute.xlu0 %325
    %327 = vrot.lane.b32.xlu0 %v300, 32
    %v328 = vpop.permute.xlu0 %327
    %334 = vrot.lane.b32.xlu0 %v297, 48
    %v335 = vpop.permute.xlu0 %334
    %336 = vrot.lane.b32.xlu0 %v298, 48
    %v337 = vpop.permute.xlu0 %336
    %338 = vrot.lane.b32.xlu0 %v300, 48
    %v339 = vpop.permute.xlu0 %338
    %340 = vrot.lane.b32.xlu0 %v301, 48
    %v341 = vpop.permute.xlu0 %340
    %vm346 = vcmask 130048
    %v347 = vsel %vm346, %v293, %v307
    %v348 = vsel %vm346, %v294, %v309
    %v349 = vsel %vm346, %v296, %v311
    %v350 = vsel %vm346, %v297, %v313
    %vm351 = vcmask 261120
    %v352 = vsel %vm351, %v347, %v322
    %v353 = vsel %vm351, %v348, %v324
    %v354 = vsel %vm351, %v349, %v326
    %v355 = vsel %vm351, %v350, %v328
    %v356 = vsel %vm65, %v352, %v335
    %v357 = vsel %vm65, %v353, %v337
    %v358 = vsel %vm65, %v354, %v339
    %v359 = vsel %vm65, %v355, %v341
    %v360 = vld [vmem:[%s2] sm:$0xff]
    %v361 = vld [vmem:[%s2 + $0x8] sm:$0xff]
    %v362 = vld [vmem:[%s2 + $0x10] sm:$0xff]
    %v363 = vld [vmem:[%s2 + $0x18] sm:$0xff]
    %v364 = vld [vmem:[%s2 + $0x20] sm:$0xff]
    %v365 = vld [vmem:[%s2 + $0x28] sm:$0xff]
    %v366 = vld [vmem:[%s2 + $0x30] sm:$0xff]
    %v367 = vld [vmem:[%s2 + $0x38] sm:$0xff]
    %v368 = vlaneseq
    %v369 = vshrl.u32 %v368, 7
    %v370 = vsub.s32 0, %v369
    %v371 = vrot.slane %v42, %v370
    %vm372 = vcmask 523264
    %v374 = vsel %vm372, %v356, 0
    %v377 = vsel %vm372, %v357, 0
    %v380 = vsel %vm372, %v358, 0
    %v383 = vsel %vm372, %v359, 0
    %385 = vmatprep.subr.mxu0 0.0
    %386 = vmatpush1.msra.mxu0 %v360
    %387 = vmatprep.subr.mxu0 0.0
    %388 = vmatpush1.msra.mxu0 %v361
    %389 = vmatprep.subr.mxu0 0.0
    %390 = vmatpush1.msra.mxu0 %v362
    %391 = vmatprep.subr.mxu0 0.0
    %392 = vmatpush1.msra.mxu0 %v363
    %393 = vmatprep.subr.mxu0 0.0
    %394 = vmatpush1.msra.mxu0 %v364
    %395 = vmatprep.subr.mxu0 0.0
    %396 = vmatpush1.msra.mxu0 %v365
    %397 = vmatprep.subr.mxu0 0.0
    %398 = vmatpush1.msra.mxu0 %v366
    %399 = vmatprep.subr.mxu0 0.0
    %400 = vmatpush1.msra.mxu0 %v367
    %401 = vmatprep.subr.mxu0 0.0
    %402 = vmatpush1.msra.mxu0 0.0
    %403 = vmatprep.subr.mxu0 0.0
    %404 = vmatpush1.msra.mxu0 0.0
    %405 = vmatprep.subr.mxu0 0.0
    %406 = vmatpush1.msra.mxu0 0.0
    %407 = vmatprep.subr.mxu0 0.0
    %408 = vmatpush1.msra.mxu0 0.0
    %409 = vmatprep.subr.mxu0 0.0
    %410 = vmatpush1.msra.mxu0 0.0
    %411 = vmatprep.subr.mxu0 0.0
    %412 = vmatpush1.msra.mxu0 0.0
    %413 = vmatprep.subr.mxu0 0.0
    %414 = vmatpush1.msra.mxu0 0.0
    %415 = vmatprep.subr.mxu0 0.0
    %416 = vmatpush1.msra.mxu0 0.0
    %417 = vmatprep.subr.mxu0 0.0
    %418 = vmatpush1.msra.mxu0 0.0
    %419 = vmatprep.subr.mxu0 0.0
    %420 = vmatpush1.msra.mxu0 0.0
    %421 = vmatprep.subr.mxu0 0.0
    %422 = vmatpush1.msra.mxu0 0.0
    %423 = vmatprep.subr.mxu0 0.0
    %424 = vmatpush1.msra.mxu0 0.0
    %425 = vmatprep.subr.mxu0 0.0
    %426 = vmatpush1.msra.mxu0 0.0
    %427 = vmatprep.subr.mxu0 0.0
    %428 = vmatpush1.msra.mxu0 0.0
    %429 = vmatprep.subr.mxu0 0.0
    %430 = vmatpush1.msra.mxu0 0.0
    %431 = vmatprep.subr.mxu0 0.0
    %432 = vmatpush1.msra.mxu0 0.0
    %433 = vmatprep.subr.mxu0 0.0
    %434 = vmatpush1.msra.mxu0 0.0
    %435 = vmatprep.subr.mxu0 0.0
    %436 = vmatpush1.msra.mxu0 0.0
    %437 = vmatprep.subr.mxu0 0.0
    %438 = vmatpush1.msra.mxu0 0.0
    %439 = vmatprep.subr.mxu0 0.0
    %440 = vmatpush1.msra.mxu0 0.0
    %441 = vmatprep.subr.mxu0 0.0
    %442 = vmatpush1.msra.mxu0 0.0
    %443 = vmatprep.subr.mxu0 0.0
    %444 = vmatpush1.msra.mxu0 0.0
    %445 = vmatprep.subr.mxu0 0.0
    %446 = vmatpush1.msra.mxu0 0.0
    %447 = vmatprep.subr.mxu0 0.0
    %448 = vmatpush1.msra.mxu0 0.0
    %449 = vmatprep.mubr.f32.mxu0 0.0
    %450 = vmatmul.mubr.f32.gmra.mrb[0].mxu0 %v374
    %v451 = vpop.f32.mrb[0].mxu0
    %v452 = vadd.f32 %v371, %v451
    %v453 = vpop.f32.mrb[0].mxu0
    %454 = vmatprep.mubr.f32.mxu0 0.0
    %455 = vmatmul.mubr.f32.gmra.mrb[0].mxu0 %v377
    %v456 = vpop.f32.mrb[0].mxu0
    %v457 = vadd.f32 %v371, %v456
    %v458 = vpop.f32.mrb[0].mxu0
    %459 = vmatprep.mubr.f32.mxu0 0.0
    %460 = vmatmul.mubr.f32.gmra.mrb[0].mxu0 %v380
    %v461 = vpop.f32.mrb[0].mxu0
    %v462 = vadd.f32 %v371, %v461
    %v463 = vpop.f32.mrb[0].mxu0
    %464 = vmatprep.mubr.f32.mxu0 0.0
    %465 = vmatmul.mubr.f32.gmra.mrb[0].mxu0 %v383
    %v466 = vpop.f32.mrb[0].mxu0
    %v467 = vadd.f32 %v371, %v466
    %v468 = vpop.f32.mrb[0].mxu0
    %469 = vdwg.mxu0
    %v470 = vmax.f32 %v452, 0.0
    %v471 = vmax.f32 %v457, 0.0
    %v472 = vmax.f32 %v462, 0.0
    %v473 = vmax.f32 %v467, 0.0
    %475 = vrot.lane.b32.xlu0 %v471, 32
    %v476 = vpop.permute.xlu0 %475
    %479 = vrot.lane.b32.xlu0 %v472, 64
    %v480 = vpop.permute.xlu0 %479
    %483 = vrot.lane.b32.xlu0 %v473, 96
    %v484 = vpop.permute.xlu0 %483
    %v486 = vsel %vm351, %v470, %v476
    %v487 = vsel %vm372, %v486, %v480
    %vm488 = vcmask 785408
    %v489 = vsel %vm488, %v487, %v484
    %v490 = vld [vmem:[%s3] sm:$0xff]
    %v491 = vld [vmem:[%s3 + $0x8] sm:$0xff]
    %v492 = vld [vmem:[%s3 + $0x10] sm:$0xff]
    %v493 = vld [vmem:[%s3 + $0x18] sm:$0xff]
    %v494 = vld [vmem:[%s3 + $0x20] sm:$0xff]
    %v495 = vld [vmem:[%s3 + $0x28] sm:$0xff]
    %v496 = vld [vmem:[%s3 + $0x30] sm:$0xff]
    %v497 = vld [vmem:[%s3 + $0x38] sm:$0xff]
    %v498 = vld [vmem:[%s3 + $0x40] sm:$0xff]
    %v499 = vld [vmem:[%s3 + $0x48] sm:$0xff]
    %v500 = vld [vmem:[%s3 + $0x50] sm:$0xff]
    %v501 = vld [vmem:[%s3 + $0x58] sm:$0xff]
    %v502 = vld [vmem:[%s3 + $0x60] sm:$0xff]
    %v503 = vld [vmem:[%s3 + $0x68] sm:$0xff]
    %v504 = vld [vmem:[%s3 + $0x70] sm:$0xff]
    %v505 = vld [vmem:[%s3 + $0x78] sm:$0xff]
    %v506 = vlaneseq
    %v507 = vshrl.u32 %v506, 7
    %v508 = vsub.s32 0, %v507
    %v509 = vrot.slane %v43, %v508
    %510 = vmatprep.subr.mxu0 0.0
    %511 = vmatpush1.msra.mxu0 %v490
    %512 = vmatprep.subr.mxu0 0.0
    %513 = vmatpush1.msra.mxu0 %v491
    %514 = vmatprep.subr.mxu0 0.0
    %515 = vmatpush1.msra.mxu0 %v492
    %516 = vmatprep.subr.mxu0 0.0
    %517 = vmatpush1.msra.mxu0 %v493
    %518 = vmatprep.subr.mxu0 0.0
    %519 = vmatpush1.msra.mxu0 %v494
    %520 = vmatprep.subr.mxu0 0.0
    %521 = vmatpush1.msra.mxu0 %v495
    %522 = vmatprep.subr.mxu0 0.0
    %523 = vmatpush1.msra.mxu0 %v496
    %524 = vmatprep.subr.mxu0 0.0
    %525 = vmatpush1.msra.mxu0 %v497
    %526 = vmatprep.subr.mxu0 0.0
    %527 = vmatpush1.msra.mxu0 %v498
    %528 = vmatprep.subr.mxu0 0.0
    %529 = vmatpush1.msra.mxu0 %v499
    %530 = vmatprep.subr.mxu0 0.0
    %531 = vmatpush1.msra.mxu0 %v500
    %532 = vmatprep.subr.mxu0 0.0
    %533 = vmatpush1.msra.mxu0 %v501
    %534 = vmatprep.subr.mxu0 0.0
    %535 = vmatpush1.msra.mxu0 %v502
    %536 = vmatprep.subr.mxu0 0.0
    %537 = vmatpush1.msra.mxu0 %v503
    %538 = vmatprep.subr.mxu0 0.0
    %539 = vmatpush1.msra.mxu0 %v504
    %540 = vmatprep.subr.mxu0 0.0
    %541 = vmatpush1.msra.mxu0 %v505
    %542 = vmatprep.subr.mxu0 0.0
    %543 = vmatpush1.msra.mxu0 0.0
    %544 = vmatprep.subr.mxu0 0.0
    %545 = vmatpush1.msra.mxu0 0.0
    %546 = vmatprep.subr.mxu0 0.0
    %547 = vmatpush1.msra.mxu0 0.0
    %548 = vmatprep.subr.mxu0 0.0
    %549 = vmatpush1.msra.mxu0 0.0
    %550 = vmatprep.subr.mxu0 0.0
    %551 = vmatpush1.msra.mxu0 0.0
    %552 = vmatprep.subr.mxu0 0.0
    %553 = vmatpush1.msra.mxu0 0.0
    %554 = vmatprep.subr.mxu0 0.0
    %555 = vmatpush1.msra.mxu0 0.0
    %556 = vmatprep.subr.mxu0 0.0
    %557 = vmatpush1.msra.mxu0 0.0
    %558 = vmatprep.subr.mxu0 0.0
    %559 = vmatpush1.msra.mxu0 0.0
    %560 = vmatprep.subr.mxu0 0.0
    %561 = vmatpush1.msra.mxu0 0.0
    %562 = vmatprep.subr.mxu0 0.0
    %563 = vmatpush1.msra.mxu0 0.0
    %564 = vmatprep.subr.mxu0 0.0
    %565 = vmatpush1.msra.mxu0 0.0
    %566 = vmatprep.subr.mxu0 0.0
    %567 = vmatpush1.msra.mxu0 0.0
    %568 = vmatprep.subr.mxu0 0.0
    %569 = vmatpush1.msra.mxu0 0.0
    %570 = vmatprep.subr.mxu0 0.0
    %571 = vmatpush1.msra.mxu0 0.0
    %572 = vmatprep.subr.mxu0 0.0
    %573 = vmatpush1.msra.mxu0 0.0
    %574 = vmatprep.mubr.f32.mxu0 0.0
    %575 = vmatmul.mubr.f32.gmra.mrb[0].mxu0 %v489
    %v576 = vpop.f32.mrb[0].mxu0
    %v577 = vadd.f32 %v509, %v576
    %v578 = vpop.f32.mrb[0].mxu0
    %579 = vdwg.mxu0
    %v580 = vmax.f32 %v577, 0.0
    %v581 = vld [vmem:[%s4] sm:$0xff]
    %v582 = vld [vmem:[%s4 + $0x8] sm:$0xff]
    %v583 = vld [vmem:[%s4 + $0x10] sm:$0xff]
    %v584 = vld [vmem:[%s4 + $0x18] sm:$0xff]
    %v585 = vld [vmem:[%s4 + $0x20] sm:$0xff]
    %v586 = vld [vmem:[%s4 + $0x28] sm:$0xff]
    %v587 = vld [vmem:[%s4 + $0x30] sm:$0xff]
    %v588 = vld [vmem:[%s4 + $0x38] sm:$0xff]
    %v589 = vlaneseq
    %v590 = vshrl.u32 %v589, 7
    %v591 = vsub.s32 0, %v590
    %v592 = vrot.slane %v44, %v591
    %v594 = vsel %vm372, %v580, 0
    %596 = vmatprep.subr.mxu0 0.0
    %597 = vmatpush1.msra.mxu0 %v581
    %598 = vmatprep.subr.mxu0 0.0
    %599 = vmatpush1.msra.mxu0 %v582
    %600 = vmatprep.subr.mxu0 0.0
    %601 = vmatpush1.msra.mxu0 %v583
    %602 = vmatprep.subr.mxu0 0.0
    %603 = vmatpush1.msra.mxu0 %v584
    %604 = vmatprep.subr.mxu0 0.0
    %605 = vmatpush1.msra.mxu0 %v585
    %606 = vmatprep.subr.mxu0 0.0
    %607 = vmatpush1.msra.mxu0 %v586
    %608 = vmatprep.subr.mxu0 0.0
    %609 = vmatpush1.msra.mxu0 %v587
    %610 = vmatprep.subr.mxu0 0.0
    %611 = vmatpush1.msra.mxu0 %v588
    %612 = vmatprep.subr.mxu0 0.0
    %613 = vmatpush1.msra.mxu0 0.0
    %614 = vmatprep.subr.mxu0 0.0
    %615 = vmatpush1.msra.mxu0 0.0
    %616 = vmatprep.subr.mxu0 0.0
    %617 = vmatpush1.msra.mxu0 0.0
    %618 = vmatprep.subr.mxu0 0.0
    %619 = vmatpush1.msra.mxu0 0.0
    %620 = vmatprep.subr.mxu0 0.0
    %621 = vmatpush1.msra.mxu0 0.0
    %622 = vmatprep.subr.mxu0 0.0
    %623 = vmatpush1.msra.mxu0 0.0
    %624 = vmatprep.subr.mxu0 0.0
    %625 = vmatpush1.msra.mxu0 0.0
    %626 = vmatprep.subr.mxu0 0.0
    %627 = vmatpush1.msra.mxu0 0.0
    %628 = vmatprep.subr.mxu0 0.0
    %629 = vmatpush1.msra.mxu0 0.0
    %630 = vmatprep.subr.mxu0 0.0
    %631 = vmatpush1.msra.mxu0 0.0
    %632 = vmatprep.subr.mxu0 0.0
    %633 = vmatpush1.msra.mxu0 0.0
    %634 = vmatprep.subr.mxu0 0.0
    %635 = vmatpush1.msra.mxu0 0.0
    %636 = vmatprep.subr.mxu0 0.0
    %637 = vmatpush1.msra.mxu0 0.0
    %638 = vmatprep.subr.mxu0 0.0
    %639 = vmatpush1.msra.mxu0 0.0
    %640 = vmatprep.subr.mxu0 0.0
    %641 = vmatpush1.msra.mxu0 0.0
    %642 = vmatprep.subr.mxu0 0.0
    %643 = vmatpush1.msra.mxu0 0.0
    %644 = vmatprep.subr.mxu0 0.0
    %645 = vmatpush1.msra.mxu0 0.0
    %646 = vmatprep.subr.mxu0 0.0
    %647 = vmatpush1.msra.mxu0 0.0
    %648 = vmatprep.subr.mxu0 0.0
    %649 = vmatpush1.msra.mxu0 0.0
    %650 = vmatprep.subr.mxu0 0.0
    %651 = vmatpush1.msra.mxu0 0.0
    %652 = vmatprep.subr.mxu0 0.0
    %653 = vmatpush1.msra.mxu0 0.0
    %654 = vmatprep.subr.mxu0 0.0
    %655 = vmatpush1.msra.mxu0 0.0
    %656 = vmatprep.subr.mxu0 0.0
    %657 = vmatpush1.msra.mxu0 0.0
    %658 = vmatprep.subr.mxu0 0.0
    %659 = vmatpush1.msra.mxu0 0.0
    %660 = vmatprep.mubr.f32.mxu0 0.0
    %661 = vmatmul.mubr.f32.gmra.mrb[0].mxu0 %v594
    %v662 = vpop.f32.mrb[0].mxu0
    %v663 = vadd.f32 %v592, %v662
    %v664 = vpop.f32.mrb[0].mxu0
    %665 = vdwg.mxu0
    %v666 = vtanh.pop %v663
    %v667 = vld [vmem:[%s5] sm:$0xff]
    %v668 = vld [vmem:[%s5 + $0x8] sm:$0xff]
    %v669 = vld [vmem:[%s5 + $0x10] sm:$0xff]
    %v670 = vld [vmem:[%s5 + $0x18] sm:$0xff]
    %v671 = vld [vmem:[%s5 + $0x20] sm:$0xff]
    %v672 = vld [vmem:[%s5 + $0x28] sm:$0xff]
    %v673 = vld [vmem:[%s5 + $0x30] sm:$0xff]
    %v674 = vld [vmem:[%s5 + $0x38] sm:$0xff]
    %v675 = vlaneseq
    %v676 = vshrl.u32 %v675, 7
    %v677 = vsub.s32 0, %v676
    %v678 = vrot.slane %v45, %v677
    %v680 = vsel %vm372, %v666, 0
    %682 = vmatprep.subr.mxu0 0.0
    %683 = vmatpush1.msra.mxu0 %v667
    %684 = vmatprep.subr.mxu0 0.0
    %685 = vmatpush1.msra.mxu0 %v668
    %686 = vmatprep.subr.mxu0 0.0
    %687 = vmatpush1.msra.mxu0 %v669
    %688 = vmatprep.subr.mxu0 0.0
    %689 = vmatpush1.msra.mxu0 %v670
    %690 = vmatprep.subr.mxu0 0.0
    %691 = vmatpush1.msra.mxu0 %v671
    %692 = vmatprep.subr.mxu0 0.0
    %693 = vmatpush1.msra.mxu0 %v672
    %694 = vmatprep.subr.mxu0 0.0
    %695 = vmatpush1.msra.mxu0 %v673
    %696 = vmatprep.subr.mxu0 0.0
    %697 = vmatpush1.msra.mxu0 %v674
    %698 = vmatprep.subr.mxu0 0.0
    %699 = vmatpush1.msra.mxu0 0.0
    %700 = vmatprep.subr.mxu0 0.0
    %701 = vmatpush1.msra.mxu0 0.0
    %702 = vmatprep.subr.mxu0 0.0
    %703 = vmatpush1.msra.mxu0 0.0
    %704 = vmatprep.subr.mxu0 0.0
    %705 = vmatpush1.msra.mxu0 0.0
    %706 = vmatprep.subr.mxu0 0.0
    %707 = vmatpush1.msra.mxu0 0.0
    %708 = vmatprep.subr.mxu0 0.0
    %709 = vmatpush1.msra.mxu0 0.0
    %710 = vmatprep.subr.mxu0 0.0
    %711 = vmatpush1.msra.mxu0 0.0
    %712 = vmatprep.subr.mxu0 0.0
    %713 = vmatpush1.msra.mxu0 0.0
    %714 = vmatprep.subr.mxu0 0.0
    %715 = vmatpush1.msra.mxu0 0.0
    %716 = vmatprep.subr.mxu0 0.0
    %717 = vmatpush1.msra.mxu0 0.0
    %718 = vmatprep.subr.mxu0 0.0
    %719 = vmatpush1.msra.mxu0 0.0
    %720 = vmatprep.subr.mxu0 0.0
    %721 = vmatpush1.msra.mxu0 0.0
    %722 = vmatprep.subr.mxu0 0.0
    %723 = vmatpush1.msra.mxu0 0.0
    %724 = vmatprep.subr.mxu0 0.0
    %725 = vmatpush1.msra.mxu0 0.0
    %726 = vmatprep.subr.mxu0 0.0
    %727 = vmatpush1.msra.mxu0 0.0
    %728 = vmatprep.subr.mxu0 0.0
    %729 = vmatpush1.msra.mxu0 0.0
    %730 = vmatprep.subr.mxu0 0.0
    %731 = vmatpush1.msra.mxu0 0.0
    %732 = vmatprep.subr.mxu0 0.0
    %733 = vmatpush1.msra.mxu0 0.0
    %734 = vmatprep.subr.mxu0 0.0
    %735 = vmatpush1.msra.mxu0 0.0
    %736 = vmatprep.subr.mxu0 0.0
    %737 = vmatpush1.msra.mxu0 0.0
    %738 = vmatprep.subr.mxu0 0.0
    %739 = vmatpush1.msra.mxu0 0.0
    %740 = vmatprep.subr.mxu0 0.0
    %741 = vmatpush1.msra.mxu0 0.0
    %742 = vmatprep.subr.mxu0 0.0
    %743 = vmatpush1.msra.mxu0 0.0
    %744 = vmatprep.subr.mxu0 0.0
    %745 = vmatpush1.msra.mxu0 0.0
    %746 = vmatprep.mubr.f32.mxu0 0.0
    %747 = vmatmul.mubr.f32.gmra.mrb[0].mxu0 %v680
    %v748 = vpop.f32.mrb[0].mxu0
    %v749 = vadd.f32 %v678, %v748
    %v750 = vpop.f32.mrb[0].mxu0
    %751 = vdwg.mxu0
    %752 = vmax.xlane.f32.xlu0 %v749
    %v753 = vpop.xlane.xlu0 %752
    %v754 = vsub.f32 %v749, %v753
    %v755 = vmul.f32 %v754, 1.442695
    %v756 = vpow.pop %v755
    %757 = vadd.xlane.f32.xlu0 %v756
    %v758 = vpop.xlane.xlu0 %757
    %v759 = vlog2.pop %v758
    %v760 = vmul.f32 %v759, 0.6931472
    %v761 = vsub.f32 %v754, %v760
    %762 = vst [vmem:[#allocation5] sm:$0xff] %v761
    // Predicated region
    $region34: #{tpu_custom_call.1} parent=1 // pred_check
      _
    $region35: #{tpu_custom_call.1} parent=1 // pred_check_branch
      %764 = sbr.rel (0) target = $region37
    $region36: #{tpu_custom_call.1} parent=1 // pred_region
      %s766 = ssub.s32 128, 128
      %767 = vsyncadd [#allocation4], %s766
      %s769 = sshll.u32 [#allocation5], 4
      %s770 = int_to_ptr.vmem [resolvable:$true] %s769
      %772 = dma.vmem_to_hbm [thread:$0]  %s770, 128, %s7, [#allocation4]
    $region37: #{tpu_custom_call.1} parent=1 // pred_fallthru
      _
    // Predicated region
    $region38: #{tpu_custom_call.1} parent=1 // pred_check
      _
    $region39: #{tpu_custom_call.1} parent=1 // pred_check_branch
      %774 = sbr.rel (0) target = $region41
    $region40: #{tpu_custom_call.1} parent=1 // pred_region
      %775 = dma.done [#allocation4], 128
    $region41: #{tpu_custom_call.1} parent=1 // pred_fallthru
      _
    %776 = vsyncpa [#allocation3], 1
    %777 = vsyncpa [#allocation4], 1

</llo_original>
